<compile_context>
chip_gen: v7x
topology: tpu7x:2x2x1
jax: 0.10.0
libtpu: 0.0.40
codegen_flags: <defaults>
</compile_context>

<pallas_src>
import functools

import jax
import jax.numpy as jnp
from jax.experimental import pallas as pl
from jax.experimental.pallas import tpu as pltpu

_H1, _H2, _H3 = 64, 128, 64
_OUT_LANES = 128  # fused output slab: lanes [0:64) = features, lane 64 = value


def _ac_kernel(x_ref, w1_ref, b1_ref, w2_ref, b2_ref, w3_ref, b3_ref,
               wc_ref, bc_ref, out_ref):
    # 3 MXU matmuls with bf16 operands / f32 accumulation; bias+relu in f32.
    x = x_ref[...].astype(jnp.bfloat16)
    h1 = jnp.dot(x, w1_ref[...], preferred_element_type=jnp.float32) + b1_ref[...]
    h1 = jnp.maximum(h1, 0.0)

    h2 = jnp.dot(h1.astype(jnp.bfloat16), w2_ref[...],
                 preferred_element_type=jnp.float32) + b2_ref[...]
    h2 = jnp.maximum(h2, 0.0)

    h3 = jnp.dot(h2.astype(jnp.bfloat16), w3_ref[...],
                 preferred_element_type=jnp.float32) + b3_ref[...]
    h3 = jnp.maximum(h3, 0.0)

    # Critic head (64 -> 1): VPU elementwise multiply + XLU lane reduction
    # instead of a near-empty N=1 MXU pass.
    v = jnp.sum(h3 * wc_ref[...], axis=-1, keepdims=True) + bc_ref[...]  # (tb, 1)

    # Single lane-dense (tb, 128) store: features then value replicated over
    # the upper 64 lanes (the wrapper reads lane 64 only).
    v_half = jnp.broadcast_to(v, (h3.shape[0], _OUT_LANES - _H3))
    out_ref[...] = jnp.concatenate([h3, v_half], axis=-1)


def _round_up(x, m):
    return (x + m - 1) // m * m


@functools.partial(jax.jit, static_argnames=("tile_b",))
def actor_critic_forward(x, params, tile_b=256):
    """ActorCritic forward. Returns (value [B,1], features [B,64]) in f32."""
    B, n_in = x.shape
    w1, b1, w2, b2, w3, b3, wc, bc = (
        params["w1"], params["b1"], params["w2"], params["b2"],
        params["w3"], params["b3"], params["wc"], params["bc"],
    )

    # Tile the batch: at least 8 rows (f32 sublanes), at most tile_b.
    tb = _round_up(min(tile_b, _round_up(B, 8)), 8)
    B_pad = _round_up(B, tb)
    if B_pad != B:
        x = jnp.pad(x, ((0, B_pad - B), (0, 0)))

    const = lambda shape: pl.BlockSpec(shape, lambda i: (0,) * len(shape))

    out = pl.pallas_call(
        _ac_kernel,
        out_shape=jax.ShapeDtypeStruct((B_pad, _OUT_LANES), jnp.float32),
        grid=(B_pad // tb,),
        in_specs=[
            pl.BlockSpec((tb, n_in), lambda i: (i, 0)),   # activations: pipelined
            const(w1.shape), const(b1.shape),             # weights/biases: resident
            const(w2.shape), const(b2.shape),
            const(w3.shape), const(b3.shape),
            const(wc.shape), const(bc.shape),
        ],
        out_specs=pl.BlockSpec((tb, _OUT_LANES), lambda i: (i, 0)),
        compiler_params=pltpu.CompilerParams(
            dimension_semantics=("parallel",),            # 2 TCs on v7x
            vmem_limit_bytes=32 * 1024 * 1024,            # safe on v5e/v6e/v7x
        ),
    )(x, w1, b1, w2, b2, w3, b3, wc, bc)

    value = out[:B, _H3:_H3 + 1]     # lane 64
    feat = out[:B, :_H3]             # lanes [0:64)
    return value, feat


def init_params(key, n_inputs):
    """Params matching the module __init__ shapes.

    Linear weights: Xavier-uniform (init_weights), stored [in, out] in bf16
    (MXU operands). Biases: default nn.Linear uniform(-1/sqrt(fan_in), ...),
    kept f32 as (1, out) rows. Critic weight kept f32 (used on the VPU path).
    """
    def xavier_bf16(k, fan_in, fan_out):
        limit = jnp.sqrt(6.0 / (fan_in + fan_out))
        w = jax.random.uniform(k, (fan_in, fan_out), jnp.float32, -limit, limit)
        return w.astype(jnp.bfloat16)

    def bias(k, fan_in, fan_out):
        limit = 1.0 / jnp.sqrt(fan_in)
        return jax.random.uniform(k, (1, fan_out), jnp.float32, -limit, limit)

    ks = jax.random.split(key, 8)
    limit_c = jnp.sqrt(6.0 / (64 + 1))
    wc = jax.random.uniform(ks[6], (1, 64), jnp.float32, -limit_c, limit_c)
    return {
        "w1": xavier_bf16(ks[0], n_inputs, 64), "b1": bias(ks[1], n_inputs, 64),
        "w2": xavier_bf16(ks[2], 64, 128),      "b2": bias(ks[3], 64, 128),
        "w3": xavier_bf16(ks[4], 128, 64),      "b3": bias(ks[5], 128, 64),
        "wc": wc,                               "bc": bias(ks[7], 64, 1),
    }


def _reference_forward(x, p):
    # Pure-JAX reference with the same numerics (bf16 MXU operands, f32 acc).
    def lin(a, w, b):
        return jnp.dot(a.astype(jnp.bfloat16), w,
                       preferred_element_type=jnp.float32) + b
    h1 = jnp.maximum(lin(x, p["w1"], p["b1"]), 0.0)
    h2 = jnp.maximum(lin(h1, p["w2"], p["b2"]), 0.0)
    h3 = jnp.maximum(lin(h2, p["w3"], p["b3"]), 0.0)
    v = jnp.sum(h3 * p["wc"], axis=-1, keepdims=True) + p["bc"]
    return v, h3


if __name__ == "__main__":
    key = jax.random.PRNGKey(0)
    k_x, k_p = jax.random.split(key)

    B, n_inputs = 8, 32
    x = jax.random.normal(k_x, (B, n_inputs), jnp.float32)
    params = init_params(k_p, n_inputs)

    value, feat = actor_critic_forward(x, params)
    jax.block_until_ready((value, feat))

    # correctness vs pure-JAX reference with identical bf16/f32 numerics
    v_ref, f_ref = _reference_forward(x, params)
    assert value.shape == (B, 1) and feat.shape == (B, 64)
    assert jnp.allclose(value, v_ref, atol=1e-3, rtol=1e-3)
    assert jnp.allclose(feat, f_ref, atol=1e-3, rtol=1e-3)

    print("KERNEL_OK")
</pallas_src>

<mosaic_0001>
module attributes {stable_mosaic.version = 11 : i64} {
  func.func @_ac_kernel(%arg0: i32, %arg1: memref<8x32xf32, #tpu.memory_space<vmem>>, %arg2: memref<32x64xbf16, #tpu.memory_space<vmem>>, %arg3: memref<1x64xf32, #tpu.memory_space<vmem>>, %arg4: memref<64x128xbf16, #tpu.memory_space<vmem>>, %arg5: memref<1x128xf32, #tpu.memory_space<vmem>>, %arg6: memref<128x64xbf16, #tpu.memory_space<vmem>>, %arg7: memref<1x64xf32, #tpu.memory_space<vmem>>, %arg8: memref<1x64xf32, #tpu.memory_space<vmem>>, %arg9: memref<1x1xf32, #tpu.memory_space<vmem>>, %arg10: memref<8x128xf32, #tpu.memory_space<vmem>>) attributes {dimension_semantics = [#tpu.dimension_semantics<parallel>], iteration_bounds = array<i64: 1>, scalar_prefetch = 0 : i64, scratch_operands = 0 : i64, tpu.core_type = #tpu.core_type<tc>, window_params = [{transform_indices = @transform_0, window_bounds = array<i64: 8, 32>}, {pipeline_mode = #tpu.pipeline_mode<synchronous>, transform_indices = @transform_1, window_bounds = array<i64: 32, 64>}, {pipeline_mode = #tpu.pipeline_mode<synchronous>, transform_indices = @transform_2, window_bounds = array<i64: 1, 64>}, {pipeline_mode = #tpu.pipeline_mode<synchronous>, transform_indices = @transform_3, window_bounds = array<i64: 64, 128>}, {pipeline_mode = #tpu.pipeline_mode<synchronous>, transform_indices = @transform_4, window_bounds = array<i64: 1, 128>}, {pipeline_mode = #tpu.pipeline_mode<synchronous>, transform_indices = @transform_5, window_bounds = array<i64: 128, 64>}, {pipeline_mode = #tpu.pipeline_mode<synchronous>, transform_indices = @transform_6, window_bounds = array<i64: 1, 64>}, {pipeline_mode = #tpu.pipeline_mode<synchronous>, transform_indices = @transform_7, window_bounds = array<i64: 1, 64>}, {pipeline_mode = #tpu.pipeline_mode<synchronous>, transform_indices = @transform_8, window_bounds = array<i64: 1, 1>}, {transform_indices = @transform_9, window_bounds = array<i64: 8, 128>}]} {
    %c0 = arith.constant 0 : index
    %c0_0 = arith.constant 0 : index
    %0 = vector.load %arg1[%c0, %c0_0] : memref<8x32xf32, #tpu.memory_space<vmem>>, vector<8x32xf32>
    %1 = arith.truncf %0 : vector<8x32xf32> to vector<8x32xbf16>
    %c0_1 = arith.constant 0 : index
    %c0_2 = arith.constant 0 : index
    %2 = vector.load %arg2[%c0_1, %c0_2] : memref<32x64xbf16, #tpu.memory_space<vmem>>, vector<32x64xbf16>
    %cst = arith.constant dense<0.000000e+00> : vector<8x64xf32>
    %3 = tpu.matmul %1, %2, %cst {dimension_numbers = #tpu.dot_dimension_numbers<[1], [0], [0], [1], [0, 0, 1, 1], [], []>} : vector<8x32xbf16>, vector<32x64xbf16>, vector<8x64xf32> -> vector<8x64xf32>
    %c0_3 = arith.constant 0 : index
    %c0_4 = arith.constant 0 : index
    %4 = vector.load %arg3[%c0_3, %c0_4] : memref<1x64xf32, #tpu.memory_space<vmem>>, vector<1x64xf32>
    %5 = vector.broadcast %4 : vector<1x64xf32> to vector<8x64xf32>
    %6 = arith.addf %3, %5 : vector<8x64xf32>
    %cst_5 = arith.constant 0.000000e+00 : f32
    %7 = vector.broadcast %cst_5 : f32 to vector<8x64xf32>
    %8 = arith.maximumf %6, %7 : vector<8x64xf32>
    %9 = arith.truncf %8 : vector<8x64xf32> to vector<8x64xbf16>
    %c0_6 = arith.constant 0 : index
    %c0_7 = arith.constant 0 : index
    %10 = vector.load %arg4[%c0_6, %c0_7] : memref<64x128xbf16, #tpu.memory_space<vmem>>, vector<64x128xbf16>
    %cst_8 = arith.constant dense<0.000000e+00> : vector<8x128xf32>
    %11 = tpu.matmul %9, %10, %cst_8 {dimension_numbers = #tpu.dot_dimension_numbers<[1], [0], [0], [1], [0, 0, 1, 1], [], []>} : vector<8x64xbf16>, vector<64x128xbf16>, vector<8x128xf32> -> vector<8x128xf32>
    %c0_9 = arith.constant 0 : index
    %c0_10 = arith.constant 0 : index
    %12 = vector.load %arg5[%c0_9, %c0_10] : memref<1x128xf32, #tpu.memory_space<vmem>>, vector<1x128xf32>
    %13 = vector.broadcast %12 : vector<1x128xf32> to vector<8x128xf32>
    %14 = arith.addf %11, %13 : vector<8x128xf32>
    %cst_11 = arith.constant 0.000000e+00 : f32
    %15 = vector.broadcast %cst_11 : f32 to vector<8x128xf32>
    %16 = arith.maximumf %14, %15 : vector<8x128xf32>
    %17 = arith.truncf %16 : vector<8x128xf32> to vector<8x128xbf16>
    %c0_12 = arith.constant 0 : index
    %c0_13 = arith.constant 0 : index
    %18 = vector.load %arg6[%c0_12, %c0_13] : memref<128x64xbf16, #tpu.memory_space<vmem>>, vector<128x64xbf16>
    %cst_14 = arith.constant dense<0.000000e+00> : vector<8x64xf32>
    %19 = tpu.matmul %17, %18, %cst_14 {dimension_numbers = #tpu.dot_dimension_numbers<[1], [0], [0], [1], [0, 0, 1, 1], [], []>} : vector<8x128xbf16>, vector<128x64xbf16>, vector<8x64xf32> -> vector<8x64xf32>
    %c0_15 = arith.constant 0 : index
    %c0_16 = arith.constant 0 : index
    %20 = vector.load %arg7[%c0_15, %c0_16] : memref<1x64xf32, #tpu.memory_space<vmem>>, vector<1x64xf32>
    %21 = vector.broadcast %20 : vector<1x64xf32> to vector<8x64xf32>
    %22 = arith.addf %19, %21 : vector<8x64xf32>
    %cst_17 = arith.constant 0.000000e+00 : f32
    %23 = vector.broadcast %cst_17 : f32 to vector<8x64xf32>
    %24 = arith.maximumf %22, %23 : vector<8x64xf32>
    %c0_18 = arith.constant 0 : index
    %c0_19 = arith.constant 0 : index
    %25 = vector.load %arg8[%c0_18, %c0_19] : memref<1x64xf32, #tpu.memory_space<vmem>>, vector<1x64xf32>
    %26 = vector.broadcast %25 : vector<1x64xf32> to vector<8x64xf32>
    %27 = arith.mulf %24, %26 : vector<8x64xf32>
    %cst_20 = arith.constant dense<0.000000e+00> : vector<8xf32>
    %28 = vector.multi_reduction <add>, %27, %cst_20 [1] : vector<8x64xf32> to vector<8xf32>
    %29 = vector.shape_cast %28 : vector<8xf32> to vector<8x1xf32>
    %c0_21 = arith.constant 0 : index
    %c0_22 = arith.constant 0 : index
    %30 = vector.load %arg9[%c0_21, %c0_22] : memref<1x1xf32, #tpu.memory_space<vmem>>, vector<1x1xf32>
    %31 = vector.broadcast %30 : vector<1x1xf32> to vector<8x1xf32>
    %32 = arith.addf %29, %31 : vector<8x1xf32>
    %33 = vector.shape_cast %32 : vector<8x1xf32> to vector<8x1xf32>
    %34 = vector.broadcast %33 : vector<8x1xf32> to vector<8x64xf32>
    %35 = tpu.concatenate %24, %34 in 1 : vector<8x64xf32>, vector<8x64xf32> -> vector<8x128xf32>
    %c0_23 = arith.constant 0 : index
    %c0_24 = arith.constant 0 : index
    %36 = vector.load %arg10[%c0_23, %c0_24] : memref<8x128xf32, #tpu.memory_space<vmem>>, vector<8x128xf32>
    tpu.vector_store %arg10[%c0_23, %c0_24], %35 {strides = array<i32>} : memref<8x128xf32, #tpu.memory_space<vmem>>, vector<8x128xf32>,
    return
  }
  func.func @transform_0(%arg0: i32) -> (i32, i32) {
    %c0_i32 = arith.constant 0 : i32
    %c0_i32_0 = arith.constant 0 : i32
    return %arg0, %c0_i32 : i32, i32
  }
  func.func @transform_1(%arg0: i32) -> (i32, i32) {
    %c0_i32 = arith.constant 0 : i32
    %c0_i32_0 = arith.constant 0 : i32
    %c0_i32_1 = arith.constant 0 : i32
    return %c0_i32, %c0_i32_0 : i32, i32
  }
  func.func @transform_2(%arg0: i32) -> (i32, i32) {
    %c0_i32 = arith.constant 0 : i32
    %c0_i32_0 = arith.constant 0 : i32
    %c0_i32_1 = arith.constant 0 : i32
    return %c0_i32, %c0_i32_0 : i32, i32
  }
  func.func @transform_3(%arg0: i32) -> (i32, i32) {
    %c0_i32 = arith.constant 0 : i32
    %c0_i32_0 = arith.constant 0 : i32
    %c0_i32_1 = arith.constant 0 : i32
    return %c0_i32, %c0_i32_0 : i32, i32
  }
  func.func @transform_4(%arg0: i32) -> (i32, i32) {
    %c0_i32 = arith.constant 0 : i32
    %c0_i32_0 = arith.constant 0 : i32
    %c0_i32_1 = arith.constant 0 : i32
    return %c0_i32, %c0_i32_0 : i32, i32
  }
  func.func @transform_5(%arg0: i32) -> (i32, i32) {
    %c0_i32 = arith.constant 0 : i32
    %c0_i32_0 = arith.constant 0 : i32
    %c0_i32_1 = arith.constant 0 : i32
    return %c0_i32, %c0_i32_0 : i32, i32
  }
  func.func @transform_6(%arg0: i32) -> (i32, i32) {
    %c0_i32 = arith.constant 0 : i32
    %c0_i32_0 = arith.constant 0 : i32
    %c0_i32_1 = arith.constant 0 : i32
    return %c0_i32, %c0_i32_0 : i32, i32
  }
  func.func @transform_7(%arg0: i32) -> (i32, i32) {
    %c0_i32 = arith.constant 0 : i32
    %c0_i32_0 = arith.constant 0 : i32
    %c0_i32_1 = arith.constant 0 : i32
    return %c0_i32, %c0_i32_0 : i32, i32
  }
  func.func @transform_8(%arg0: i32) -> (i32, i32) {
    %c0_i32 = arith.constant 0 : i32
    %c0_i32_0 = arith.constant 0 : i32
    %c0_i32_1 = arith.constant 0 : i32
    return %c0_i32, %c0_i32_0 : i32, i32
  }
  func.func @transform_9(%arg0: i32) -> (i32, i32) {
    %c0_i32 = arith.constant 0 : i32
    %c0_i32_0 = arith.constant 0 : i32
    return %arg0, %c0_i32 : i32, i32
  }
}

</mosaic_0001>

<llo_original>
// kernel: actor_critic_forward.1
$region0: #{actor_critic_forward.1}
  #allocation0 [shape = 'u32[]', space=smem, size = 0x4, offset = 0x4, fixed_abs, tag = 'smem constant byte address 0x4 - core index']
  #allocation1 [shape = 'u32[144,128]{1,0:T(1,128)}', space=vmem, size = 0x12000, scoped, tag = 'internal scratch']
  #allocation2 [shape = 'f32[1,1]{1,0:T(1,128)S(1)}', space=vmem, size = 0x200, scoped, tag = 'scoped memory for actor_critic_forward.1']
  %s0 = inlined_call_operand.vmem [shape: f32[8,32], index: 0, kind: input, shape index: {}]
  %s1 = inlined_call_operand.vmem [shape: bf16[32,64], index: 1, kind: input, shape index: {}]
  %s2 = inlined_call_operand.vmem [shape: f32[1,64], index: 2, kind: input, shape index: {}]
  %s3 = inlined_call_operand.vmem [shape: bf16[64,128], index: 3, kind: input, shape index: {}]
  %s4 = inlined_call_operand.vmem [shape: f32[1,128], index: 4, kind: input, shape index: {}]
  %s5 = inlined_call_operand.vmem [shape: bf16[128,64], index: 5, kind: input, shape index: {}]
  %s6 = inlined_call_operand.vmem [shape: f32[1,64], index: 6, kind: input, shape index: {}]
  %s7 = inlined_call_operand.vmem [shape: f32[1,64], index: 7, kind: input, shape index: {}]
  %s8 = inlined_call_operand.<no memory space> [shape: f32[1,1], index: 8, kind: input, shape index: {}]
  %s9 = inlined_call_operand.vmem [shape: f32[8,128], index: 9, kind: output, shape index: {}]
  %s10 = sld [smem:[#allocation0]]
  $region46: #{actor_critic_forward.1} parent=0
    _
  %s12 = ssub.s32 1, %s10
  %s13 = scalar_select 0, %s12, %s10
  %v14 = vstv %s8
  %15 = vst [vmem:[#allocation2] sm:$0x1] %v14
  // Predicated region
  $region2: #{actor_critic_forward.1} parent=0 // pred_check
    _
  $region3: #{actor_critic_forward.1} parent=0 // pred_check_branch
    %17 = sbr.rel (0) target = $region5
  $region4: #{actor_critic_forward.1} parent=0 // pred_region
    _
  $region5: #{actor_critic_forward.1} parent=0 // pred_fallthru
    _
  // Predicated region
  $region6: #{actor_critic_forward.1} parent=0 // pred_check
    _
  $region7: #{actor_critic_forward.1} parent=0 // pred_check_branch
    %19 = sbr.rel (0) target = $region9
  $region8: #{actor_critic_forward.1} parent=0 // pred_region
    _
  $region9: #{actor_critic_forward.1} parent=0 // pred_fallthru
    _
  // Predicated region
  $region10: #{actor_critic_forward.1} parent=0 // pred_check
    _
  $region11: #{actor_critic_forward.1} parent=0 // pred_check_branch
    %21 = sbr.rel (0) target = $region13
  $region12: #{actor_critic_forward.1} parent=0 // pred_region
    _
  $region13: #{actor_critic_forward.1} parent=0 // pred_fallthru
    _
  // Predicated region
  $region14: #{actor_critic_forward.1} parent=0 // pred_check
    _
  $region15: #{actor_critic_forward.1} parent=0 // pred_check_branch
    %23 = sbr.rel (0) target = $region17
  $region16: #{actor_critic_forward.1} parent=0 // pred_region
    _
  $region17: #{actor_critic_forward.1} parent=0 // pred_fallthru
    _
  // Predicated region
  $region18: #{actor_critic_forward.1} parent=0 // pred_check
    _
  $region19: #{actor_critic_forward.1} parent=0 // pred_check_branch
    %25 = sbr.rel (0) target = $region21
  $region20: #{actor_critic_forward.1} parent=0 // pred_region
    _
  $region21: #{actor_critic_forward.1} parent=0 // pred_fallthru
    _
  // Predicated region
  $region22: #{actor_critic_forward.1} parent=0 // pred_check
    _
  $region23: #{actor_critic_forward.1} parent=0 // pred_check_branch
    %27 = sbr.rel (0) target = $region25
  $region24: #{actor_critic_forward.1} parent=0 // pred_region
    _
  $region25: #{actor_critic_forward.1} parent=0 // pred_fallthru
    _
  // Predicated region
  $region26: #{actor_critic_forward.1} parent=0 // pred_check
    _
  $region27: #{actor_critic_forward.1} parent=0 // pred_check_branch
    %29 = sbr.rel (0) target = $region29
  $region28: #{actor_critic_forward.1} parent=0 // pred_region
    _
  $region29: #{actor_critic_forward.1} parent=0 // pred_fallthru
    _
  // Predicated region
  $region30: #{actor_critic_forward.1} parent=0 // pred_check
    _
  $region31: #{actor_critic_forward.1} parent=0 // pred_check_branch
    %31 = sbr.rel (0) target = $region33
  $region32: #{actor_critic_forward.1} parent=0 // pred_region
    _
  $region33: #{actor_critic_forward.1} parent=0 // pred_fallthru
    _
  // Predicated region
  $region34: #{actor_critic_forward.1} parent=0 // pred_check
    _
  $region35: #{actor_critic_forward.1} parent=0 // pred_check_branch
    %33 = sbr.rel (0) target = $region37
  $region36: #{actor_critic_forward.1} parent=0 // pred_region
    _
  $region37: #{actor_critic_forward.1} parent=0 // pred_fallthru
    _
  %v35 = vld [vmem:[%s0] sm:$0xff]
  %v36 = vpack.c.bf16 %v35, %v35
  %v37 = vld [vmem:[%s1] sm:$0xf]
  %v38 = vld [vmem:[%s1 + $0x4] sm:$0xf]
  %v39 = vld [vmem:[%s1 + $0x8] sm:$0xf]
  %v40 = vld [vmem:[%s1 + $0xc] sm:$0xf]
  %v41 = vld [vmem:[%s2] sm:$0x1]
  %v43 = vlaneseq
  %v44 = vshrl.u32 %v43, 7
  %v45 = vsub.s32 0, %v44
  %v46 = vrot.slane %v41, %v45
  %v52 = vunpack.c.l.b16 %v37
  %v53 = vunpack.c.l.b16 %v38
  %v54 = vunpack.c.l.b16 %v39
  %v55 = vunpack.c.l.b16 %v40
  %v56 = vpack.c.b16 %v53, %v52
  %v57 = vpack.c.b16 %v55, %v54
  %vm60 = vcmask 261120
  %v62 = vsel %vm60, %v36, 0
  %64 = vmatprep.subr.bf16.mxu0 0
  %65 = vmatpush1.bf16.msra.mxu0 %v56
  %66 = vmatprep.subr.bf16.mxu0 0
  %67 = vmatpush1.bf16.msra.mxu0 %v57
  %68 = vmatprep.subr.bf16.mxu0 0
  %69 = vmatpush1.bf16.msra.mxu0 0
  %70 = vmatprep.subr.bf16.mxu0 0
  %71 = vmatpush1.bf16.msra.mxu0 0
  %72 = vmatprep.subr.bf16.mxu0 0
  %73 = vmatpush1.bf16.msra.mxu0 0
  %74 = vmatprep.subr.bf16.mxu0 0
  %75 = vmatpush1.bf16.msra.mxu0 0
  %76 = vmatprep.subr.bf16.mxu0 0
  %77 = vmatpush1.bf16.msra.mxu0 0
  %78 = vmatprep.subr.bf16.mxu0 0
  %79 = vmatpush1.bf16.msra.mxu0 0
  %80 = vmatprep.subr.bf16.mxu0 0
  %81 = vmatpush1.bf16.msra.mxu0 0
  %82 = vmatprep.subr.bf16.mxu0 0
  %83 = vmatpush1.bf16.msra.mxu0 0
  %84 = vmatprep.subr.bf16.mxu0 0
  %85 = vmatpush1.bf16.msra.mxu0 0
  %86 = vmatprep.subr.bf16.mxu0 0
  %87 = vmatpush1.bf16.msra.mxu0 0
  %88 = vmatprep.subr.bf16.mxu0 0
  %89 = vmatpush1.bf16.msra.mxu0 0
  %90 = vmatprep.subr.bf16.mxu0 0
  %91 = vmatpush1.bf16.msra.mxu0 0
  %92 = vmatprep.subr.bf16.mxu0 0
  %93 = vmatpush1.bf16.msra.mxu0 0
  %94 = vmatprep.subr.bf16.mxu0 0
  %95 = vmatpush1.bf16.msra.mxu0 0
  %96 = vmatprep.mubr.bf16.mxu0 0
  %97 = vmatmul.mubr.bf16.gmra.mrb[0].mxu0 %v62
  %v98 = vpop.f32.mrb[0].mxu0
  %v99 = vadd.f32 %v46, %v98
  %v100 = vpop.f32.mrb[0].mxu0
  %v101 = vpop.f32.mrb[0].mxu0
  %v102 = vpop.f32.mrb[0].mxu0
  %103 = vdwg.mxu0
  %v104 = vmax.f32 %v99, 0.0
  %v105 = vpack.c.bf16 %v104, %v104
  %v106 = vld [vmem:[%s3] sm:$0xf]
  %v107 = vld [vmem:[%s3 + $0x4] sm:$0xf]
  %v108 = vld [vmem:[%s3 + $0x8] sm:$0xf]
  %v109 = vld [vmem:[%s3 + $0xc] sm:$0xf]
  %v110 = vld [vmem:[%s3 + $0x10] sm:$0xf]
  %v111 = vld [vmem:[%s3 + $0x14] sm:$0xf]
  %v112 = vld [vmem:[%s3 + $0x18] sm:$0xf]
  %v113 = vld [vmem:[%s3 + $0x1c] sm:$0xf]
  %v114 = vld [vmem:[%s4] sm:$0x1]
  %v116 = vlaneseq
  %v117 = vshrl.u32 %v116, 7
  %v118 = vsub.s32 0, %v117
  %v119 = vrot.slane %v114, %v118
  %v129 = vunpack.c.l.b16 %v106
  %v130 = vunpack.c.l.b16 %v107
  %v131 = vunpack.c.l.b16 %v108
  %v132 = vunpack.c.l.b16 %v109
  %v133 = vunpack.c.l.b16 %v110
  %v134 = vunpack.c.l.b16 %v111
  %v135 = vunpack.c.l.b16 %v112
  %v136 = vunpack.c.l.b16 %v113
  %v137 = vpack.c.b16 %v130, %v129
  %v138 = vpack.c.b16 %v132, %v131
  %v139 = vpack.c.b16 %v134, %v133
  %v140 = vpack.c.b16 %v136, %v135
  %vm145 = vcmask 523264
  %v147 = vsel %vm145, %v105, 0
  %149 = vmatprep.subr.bf16.mxu0 0
  %150 = vmatpush1.bf16.msra.mxu0 %v137
  %151 = vmatprep.subr.bf16.mxu0 0
  %152 = vmatpush1.bf16.msra.mxu0 %v138
  %153 = vmatprep.subr.bf16.mxu0 0
  %154 = vmatpush1.bf16.msra.mxu0 %v139
  %155 = vmatprep.subr.bf16.mxu0 0
  %156 = vmatpush1.bf16.msra.mxu0 %v140
  %157 = vmatprep.subr.bf16.mxu0 0
  %158 = vmatpush1.bf16.msra.mxu0 0
  %159 = vmatprep.subr.bf16.mxu0 0
  %160 = vmatpush1.bf16.msra.mxu0 0
  %161 = vmatprep.subr.bf16.mxu0 0
  %162 = vmatpush1.bf16.msra.mxu0 0
  %163 = vmatprep.subr.bf16.mxu0 0
  %164 = vmatpush1.bf16.msra.mxu0 0
  %165 = vmatprep.subr.bf16.mxu0 0
  %166 = vmatpush1.bf16.msra.mxu0 0
  %167 = vmatprep.subr.bf16.mxu0 0
  %168 = vmatpush1.bf16.msra.mxu0 0
  %169 = vmatprep.subr.bf16.mxu0 0
  %170 = vmatpush1.bf16.msra.mxu0 0
  %171 = vmatprep.subr.bf16.mxu0 0
  %172 = vmatpush1.bf16.msra.mxu0 0
  %173 = vmatprep.subr.bf16.mxu0 0
  %174 = vmatpush1.bf16.msra.mxu0 0
  %175 = vmatprep.subr.bf16.mxu0 0
  %176 = vmatpush1.bf16.msra.mxu0 0
  %177 = vmatprep.subr.bf16.mxu0 0
  %178 = vmatpush1.bf16.msra.mxu0 0
  %179 = vmatprep.subr.bf16.mxu0 0
  %180 = vmatpush1.bf16.msra.mxu0 0
  %181 = vmatprep.mubr.bf16.mxu0 0
  %182 = vmatmul.mubr.bf16.gmra.mrb[0].mxu0 %v147
  %v183 = vpop.f32.mrb[0].mxu0
  %v184 = vadd.f32 %v119, %v183
  %v185 = vpop.f32.mrb[0].mxu0
  %v186 = vpop.f32.mrb[0].mxu0
  %v187 = vpop.f32.mrb[0].mxu0
  %188 = vdwg.mxu0
  %v189 = vmax.f32 %v184, 0.0
  %v190 = vpack.c.bf16 %v189, %v189
  %v191 = vld [vmem:[%s5] sm:$0xf]
  %v192 = vld [vmem:[%s5 + $0x4] sm:$0xf]
  %v193 = vld [vmem:[%s5 + $0x8] sm:$0xf]
  %v194 = vld [vmem:[%s5 + $0xc] sm:$0xf]
  %v195 = vld [vmem:[%s5 + $0x10] sm:$0xf]
  %v196 = vld [vmem:[%s5 + $0x14] sm:$0xf]
  %v197 = vld [vmem:[%s5 + $0x18] sm:$0xf]
  %v198 = vld [vmem:[%s5 + $0x1c] sm:$0xf]
  %v199 = vld [vmem:[%s5 + $0x20] sm:$0xf]
  %v200 = vld [vmem:[%s5 + $0x24] sm:$0xf]
  %v201 = vld [vmem:[%s5 + $0x28] sm:$0xf]
  %v202 = vld [vmem:[%s5 + $0x2c] sm:$0xf]
  %v203 = vld [vmem:[%s5 + $0x30] sm:$0xf]
  %v204 = vld [vmem:[%s5 + $0x34] sm:$0xf]
  %v205 = vld [vmem:[%s5 + $0x38] sm:$0xf]
  %v206 = vld [vmem:[%s5 + $0x3c] sm:$0xf]
  %v207 = vld [vmem:[%s6] sm:$0x1]
  %v209 = vlaneseq
  %v210 = vshrl.u32 %v209, 7
  %v211 = vsub.s32 0, %v210
  %v212 = vrot.slane %v207, %v211
  %v230 = vunpack.c.l.b16 %v191
  %v231 = vunpack.c.l.b16 %v192
  %v232 = vunpack.c.l.b16 %v193
  %v233 = vunpack.c.l.b16 %v194
  %v234 = vunpack.c.l.b16 %v195
  %v235 = vunpack.c.l.b16 %v196
  %v236 = vunpack.c.l.b16 %v197
  %v237 = vunpack.c.l.b16 %v198
  %v238 = vunpack.c.l.b16 %v199
  %v239 = vunpack.c.l.b16 %v200
  %v240 = vunpack.c.l.b16 %v201
  %v241 = vunpack.c.l.b16 %v202
  %v242 = vunpack.c.l.b16 %v203
  %v243 = vunpack.c.l.b16 %v204
  %v244 = vunpack.c.l.b16 %v205
  %v245 = vunpack.c.l.b16 %v206
  %v246 = vpack.c.b16 %v231, %v230
  %v247 = vpack.c.b16 %v233, %v232
  %v248 = vpack.c.b16 %v235, %v234
  %v249 = vpack.c.b16 %v237, %v236
  %v250 = vpack.c.b16 %v239, %v238
  %v251 = vpack.c.b16 %v241, %v240
  %v252 = vpack.c.b16 %v243, %v242
  %v253 = vpack.c.b16 %v245, %v244
  %262 = vmatprep.subr.bf16.mxu0 0
  %263 = vmatpush1.bf16.msra.mxu0 %v246
  %264 = vmatprep.subr.bf16.mxu0 0
  %265 = vmatpush1.bf16.msra.mxu0 %v247
  %266 = vmatprep.subr.bf16.mxu0 0
  %267 = vmatpush1.bf16.msra.mxu0 %v248
  %268 = vmatprep.subr.bf16.mxu0 0
  %269 = vmatpush1.bf16.msra.mxu0 %v249
  %270 = vmatprep.subr.bf16.mxu0 0
  %271 = vmatpush1.bf16.msra.mxu0 %v250
  %272 = vmatprep.subr.bf16.mxu0 0
  %273 = vmatpush1.bf16.msra.mxu0 %v251
  %274 = vmatprep.subr.bf16.mxu0 0
  %275 = vmatpush1.bf16.msra.mxu0 %v252
  %276 = vmatprep.subr.bf16.mxu0 0
  %277 = vmatpush1.bf16.msra.mxu0 %v253
  %278 = vmatprep.subr.bf16.mxu0 0
  %279 = vmatpush1.bf16.msra.mxu0 0
  %280 = vmatprep.subr.bf16.mxu0 0
  %281 = vmatpush1.bf16.msra.mxu0 0
  %282 = vmatprep.subr.bf16.mxu0 0
  %283 = vmatpush1.bf16.msra.mxu0 0
  %284 = vmatprep.subr.bf16.mxu0 0
  %285 = vmatpush1.bf16.msra.mxu0 0
  %286 = vmatprep.subr.bf16.mxu0 0
  %287 = vmatpush1.bf16.msra.mxu0 0
  %288 = vmatprep.subr.bf16.mxu0 0
  %289 = vmatpush1.bf16.msra.mxu0 0
  %290 = vmatprep.subr.bf16.mxu0 0
  %291 = vmatpush1.bf16.msra.mxu0 0
  %292 = vmatprep.subr.bf16.mxu0 0
  %293 = vmatpush1.bf16.msra.mxu0 0
  %294 = vmatprep.mubr.bf16.mxu0 0
  %295 = vmatmul.mubr.bf16.gmra.mrb[0].mxu0 %v190
  %v296 = vpop.f32.mrb[0].mxu0
  %v297 = vadd.f32 %v212, %v296
  %v298 = vpop.f32.mrb[0].mxu0
  %v299 = vpop.f32.mrb[0].mxu0
  %v300 = vpop.f32.mrb[0].mxu0
  %301 = vdwg.mxu0
  %v302 = vmax.f32 %v297, 0.0
  %v303 = vld [vmem:[%s7] sm:$0x1]
  %v305 = vlaneseq
  %v306 = vshrl.u32 %v305, 7
  %v307 = vsub.s32 0, %v306
  %v308 = vrot.slane %v303, %v307
  %v310 = vmul.f32 %v302, %v308
  %v311 = vsel %vm145, %v310, 0.0
  %312 = vadd.xlane.f32.xlu0 %v311
  %v313 = vpop.xlane.xlu0 %312
  %v314 = vld [vmem:[#allocation2] sm:$0x1]
  %v316 = vlaneseq
  %v317 = vshrl.u32 %v316, 7
  %v318 = vsub.s32 0, %v317
  %v319 = vrot.slane %v314, %v318
  %v321 = vadd.f32 %v313, %v319
  %323 = vset.pattern.permute.xlu0 0
  %324 = vperm.xlu0 %323, %v321
  %v325 = vpop.permute.xlu0 %324
  %v327 = vsel %vm145, %v302, %v325
  %328 = vst [vmem:[%s9] sm:$0xff] %v327
  // Predicated region
  $region38: #{actor_critic_forward.1} parent=0 // pred_check
    _
  $region39: #{actor_critic_forward.1} parent=0 // pred_check_branch
    %330 = sbr.rel (0) target = $region41
  $region40: #{actor_critic_forward.1} parent=0 // pred_region
    _
  $region41: #{actor_critic_forward.1} parent=0 // pred_fallthru
    _
  // Predicated region
  $region42: #{actor_critic_forward.1} parent=0 // pred_check
    _
  $region43: #{actor_critic_forward.1} parent=0 // pred_check_branch
    %332 = sbr.rel (0) target = $region45
  $region44: #{actor_critic_forward.1} parent=0 // pred_region
    _
  $region45: #{actor_critic_forward.1} parent=0 // pred_fallthru
    _

</llo_original>
